<compile_context>
chip_gen: v5e
topology: v5e:2x2
jax: 0.10.0
libtpu: 0.0.40
codegen_flags: <defaults>
</compile_context>

<pallas_src>
import jax
import jax.numpy as jnp
from jax.experimental import pallas as pl
from jax.experimental.pallas import tpu as pltpu


def _round_up(n, m):
    return ((n + m - 1) // m) * m


def _cdiv(a, b):
    return (a + b - 1) // b


def _vmem_capacity_bytes():
    """Per-core VMEM capacity; conservative 64 MiB (v7x) fallback."""
    try:
        return int(pltpu.get_tpu_info().vmem_capacity_bytes)
    except Exception:
        return 64 * 1024 * 1024


# ----------------------------- kernels --------------------------------------


def _gate_kernel_fused(x_ref, w_ref, out_ref):
    """Single fused MXU matmul: LHS = [SiLU(x) | x], W = [[W_if, 0], [0, W_zo]].

    x_ref:   (TM, E)
    w_ref:   (2E, 4E)
    out_ref: (TM, 4E)  -- one full-width lane-dense store.
    """
    x = x_ref[...].astype(jnp.float32)
    xs = x * jax.nn.sigmoid(x)                       # SiLU in f32 (EUP)
    lhs = jnp.concatenate([xs, x], axis=-1).astype(w_ref.dtype)
    acc = jnp.dot(lhs, w_ref[...], preferred_element_type=jnp.float32)
    out_ref[...] = acc.astype(out_ref.dtype)


def _gate_kernel_split(x_ref, w_if_ref, w_zo_ref, out_ref):
    """Two-matmul path for large E (each half is >= 256 lanes -> dense stores).

    x_ref:    (TM, E)
    w_if_ref: (E, 2E)   applied to SiLU(x)
    w_zo_ref: (E, 2E)   applied to x
    out_ref:  (TM, 4E)
    """
    x = x_ref[...].astype(jnp.float32)
    xs = x * jax.nn.sigmoid(x)
    out_if = jnp.dot(xs.astype(w_if_ref.dtype), w_if_ref[...],
                     preferred_element_type=jnp.float32)
    out_zo = jnp.dot(x.astype(w_zo_ref.dtype), w_zo_ref[...],
                     preferred_element_type=jnp.float32)
    half = out_ref.shape[1] // 2                     # = 2E (multiple of 128 here)
    out_ref[:, :half] = out_if.astype(out_ref.dtype)
    out_ref[:, half:] = out_zo.astype(out_ref.dtype)


# --------------------------- weight preparation ------------------------------


def _blockdiag(w):
    """Fold headwise weight (H, O, D) into block-diagonal (H*D, H*O) so that
    (x @ W_bd) == reshape(einsum('...hd,hod->...ho', x_heads, w))."""
    H, O, D = w.shape
    wt = jnp.transpose(w, (0, 2, 1))                 # (H, D, O)
    eye = jnp.eye(H, dtype=w.dtype)                  # (H, H)
    bd = eye[:, None, :, None] * wt[:, :, None, :]   # (H, D, H, O)
    return bd.reshape(H * D, H * O)


def prepare_slstm_weights(w_forget, w_input, w_z, w_o,
                          dtype=jnp.bfloat16, fuse=None):
    """One-time weight prep (hoist out of the per-call path).

    Returns a 1-tuple (fused (2E,4E) weight) when 2E fits the MXU contraction
    width, else a 2-tuple of (E,2E) weights for the two-matmul path.
    """
    H, _, D = w_forget.shape
    E = H * D
    w_if = jnp.concatenate([_blockdiag(w_forget), _blockdiag(w_input)], axis=1)
    w_zo = jnp.concatenate([_blockdiag(w_z), _blockdiag(w_o)], axis=1)
    if fuse is None:
        fuse = (2 * E) <= 256          # MXU pads K to 128/256 anyway
    if fuse:
        zeros = jnp.zeros((E, 2 * E), w_if.dtype)
        w_fused = jnp.concatenate(
            [jnp.concatenate([w_if, zeros], axis=1),
             jnp.concatenate([zeros, w_zo], axis=1)], axis=0)   # (2E, 4E)
        return (w_fused.astype(dtype),)
    return (w_if.astype(dtype), w_zo.astype(dtype))


# ------------------------------- forward -------------------------------------


def slstm_forward(x, weights, *, tm_max=2048, out_dtype=None):
    """Returns sLSTM_input, the value returned by the PyTorch sLSTM.forward.

    x:       (B, S, E)
    weights: tuple from prepare_slstm_weights (1-tuple = fused, 2-tuple = split)
    """
    B, S, E = x.shape
    out_dtype = x.dtype if out_dtype is None else jnp.dtype(out_dtype)
    T = B * S
    x2d = x.reshape(T, E)

    fused = len(weights) == 1
    if fused:
        (w_fused,) = weights
        assert w_fused.shape == (2 * E, 4 * E)
        w_alloc = 2 * w_fused.size * w_fused.dtype.itemsize      # double-buffered
    else:
        w_if, w_zo = weights
        assert w_if.shape == (E, 2 * E) and w_zo.shape == (E, 2 * E)
        w_alloc = 2 * (w_if.size * w_if.dtype.itemsize
                       + w_zo.size * w_zo.dtype.itemsize)

    # ---- per-chip VMEM-budgeted token tile ----------------------------------
    vmem_cap = _vmem_capacity_bytes()
    vmem_limit = int(min(0.9 * vmem_cap, 112 * 2**20))
    vmem_limit = max(vmem_limit, 32 * 2**20)
    tile_budget = int(min(0.55 * vmem_cap, 72 * 2**20))          # pipeline buffers

    x_b = x2d.dtype.itemsize
    o_b = jnp.dtype(out_dtype).itemsize
    # double-buffered input + output tiles plus generous f32 temporaries
    per_row = 2 * E * x_b + 2 * 4 * E * o_b + 36 * E
    tm = max(8, max(0, tile_budget - w_alloc) // per_row)
    tm = min(tm, tm_max)
    if T >= 1024:
        # >= 2 grid steps so dimension_semantics=("parallel",) can shard token
        # tiles across v7x's two TensorCores.
        tm = min(tm, _round_up(_cdiv(T, 2), 8))
    tm = max(8, (tm // 8) * 8)
    tm = min(tm, _round_up(T, 8))
    grid = (_cdiv(T, tm),)            # ragged tail handled by Pallas; no pad/slice

    if fused:
        flops = 2 * T * (2 * E) * (4 * E)
    else:
        flops = 2 * (2 * T * E * (2 * E))
    bytes_accessed = int(
        x2d.size * x_b
        + sum(wi.size * wi.dtype.itemsize for wi in weights)
        + T * 4 * E * o_b)

    if fused:
        kernel = _gate_kernel_fused
        w_specs = [pl.BlockSpec((2 * E, 4 * E), lambda i: (0, 0))]
    else:
        kernel = _gate_kernel_split
        w_specs = [pl.BlockSpec((E, 2 * E), lambda i: (0, 0)),
                   pl.BlockSpec((E, 2 * E), lambda i: (0, 0))]

    out2d = pl.pallas_call(
        kernel,
        out_shape=jax.ShapeDtypeStruct((T, 4 * E), out_dtype),
        grid_spec=pltpu.PrefetchScalarGridSpec(
            num_scalar_prefetch=0,
            grid=grid,
            in_specs=[pl.BlockSpec((tm, E), lambda i: (i, 0))] + w_specs,
            out_specs=pl.BlockSpec((tm, 4 * E), lambda i: (i, 0)),
        ),
        compiler_params=pltpu.CompilerParams(
            dimension_semantics=("parallel",),
            vmem_limit_bytes=vmem_limit),
        cost_estimate=pl.CostEstimate(
            flops=int(flops),
            transcendentals=int(T * E),
            bytes_accessed=bytes_accessed),
    )(x2d, *weights)

    return out2d.reshape(B, S, 4 * E)


# --------------------------------- demo ---------------------------------------

if __name__ == "__main__":
    # Small shapes consistent with the module: embed_size=32, num_heads=4.
    B, S, E, H = 2, 8, 32, 4
    D = E // H

    key = jax.random.PRNGKey(0)
    kx, kf, ki, kz, ko = jax.random.split(key, 5)

    x = jax.random.normal(kx, (B, S, E), dtype=jnp.float32)

    # LinearHeadwiseExpand weights: shape (num_heads, out_per_head, in_per_head).
    # reset_parameters re-inits forget/z/output gates with std-normal; the input
    # gate keeps its __init__ scale std=(2/5/D)**0.5 (the reference re-inits
    # forget_gate twice by mistake).
    w_forget = jax.random.normal(kf, (H, D, D), dtype=jnp.float32)
    w_input = jax.random.normal(ki, (H, D, D), dtype=jnp.float32) * (2.0 / 5.0 / D) ** 0.5
    w_z = jax.random.normal(kz, (H, D, D), dtype=jnp.float32)
    w_o = jax.random.normal(ko, (H, D, D), dtype=jnp.float32)

    # Weight prep is hoisted out of the per-call path (built once, bf16).
    weights = prepare_slstm_weights(w_forget, w_input, w_z, w_o, dtype=jnp.bfloat16)

    fwd = jax.jit(slstm_forward)
    out = jax.block_until_ready(fwd(x, weights))

    # Pure-JAX reference of the returned sLSTM_input, with matching matmul
    # precision (bf16 operands, f32 SiLU and f32 accumulation).
    def headwise(xv, w):
        xh = xv.reshape(B, S, H, D).astype(jnp.bfloat16)
        return jnp.einsum("bshd,hod->bsho", xh, w.astype(jnp.bfloat16),
                          preferred_element_type=jnp.float32).reshape(B, S, E).astype(x.dtype)

    xs = x * jax.nn.sigmoid(x)
    ref = jnp.concatenate(
        [headwise(xs, w_forget), headwise(xs, w_input), headwise(x, w_z), headwise(x, w_o)],
        axis=-1,
    )

    assert out.shape == (B, S, 4 * E), out.shape
    assert jnp.allclose(out, ref, atol=2e-3, rtol=2e-3), float(jnp.max(jnp.abs(out - ref)))
    print("KERNEL_OK")
</pallas_src>

<mosaic_0001>
module attributes {stable_mosaic.version = 11 : i64} {
  func.func @_gate_kernel_fused(%arg0: i32, %arg1: memref<16x32xf32, #tpu.memory_space<vmem>>, %arg2: memref<64x128xbf16, #tpu.memory_space<vmem>>, %arg3: memref<16x128xf32, #tpu.memory_space<vmem>>) attributes {dimension_semantics = [#tpu.dimension_semantics<parallel>], iteration_bounds = array<i64: 1>, scalar_prefetch = 0 : i64, scratch_operands = 0 : i64, tpu.core_type = #tpu.core_type<tc>, window_params = [{transform_indices = @transform_0, window_bounds = array<i64: 16, 32>}, {pipeline_mode = #tpu.pipeline_mode<synchronous>, transform_indices = @transform_1, window_bounds = array<i64: 64, 128>}, {transform_indices = @transform_2, window_bounds = array<i64: 16, 128>}]} {
    %c0 = arith.constant 0 : index
    %c0_0 = arith.constant 0 : index
    %0 = vector.load %arg1[%c0, %c0_0] : memref<16x32xf32, #tpu.memory_space<vmem>>, vector<16x32xf32>
    %1 = arith.negf %0 : vector<16x32xf32>
    %2 = math.exp %1 : vector<16x32xf32>
    %cst = arith.constant 1.000000e+00 : f32
    %3 = vector.broadcast %cst : f32 to vector<16x32xf32>
    %4 = arith.addf %3, %2 : vector<16x32xf32>
    %5 = arith.divf %3, %4 : vector<16x32xf32>
    %6 = arith.mulf %0, %5 : vector<16x32xf32>
    %7 = tpu.concatenate %6, %0 in 1 : vector<16x32xf32>, vector<16x32xf32> -> vector<16x64xf32>
    %8 = arith.truncf %7 : vector<16x64xf32> to vector<16x64xbf16>
    %c0_1 = arith.constant 0 : index
    %c0_2 = arith.constant 0 : index
    %9 = vector.load %arg2[%c0_1, %c0_2] : memref<64x128xbf16, #tpu.memory_space<vmem>>, vector<64x128xbf16>
    %cst_3 = arith.constant dense<0.000000e+00> : vector<16x128xf32>
    %10 = tpu.matmul %8, %9, %cst_3 {dimension_numbers = #tpu.dot_dimension_numbers<[1], [0], [0], [1], [0, 0, 1, 1], [], []>} : vector<16x64xbf16>, vector<64x128xbf16>, vector<16x128xf32> -> vector<16x128xf32>
    %c0_4 = arith.constant 0 : index
    %c0_5 = arith.constant 0 : index
    %11 = vector.load %arg3[%c0_4, %c0_5] : memref<16x128xf32, #tpu.memory_space<vmem>>, vector<16x128xf32>
    tpu.vector_store %arg3[%c0_4, %c0_5], %10 {strides = array<i32>} : memref<16x128xf32, #tpu.memory_space<vmem>>, vector<16x128xf32>,
    return
  }
  func.func @transform_0(%arg0: i32) -> (i32, i32) {
    %c0_i32 = arith.constant 0 : i32
    %c0_i32_0 = arith.constant 0 : i32
    return %arg0, %c0_i32 : i32, i32
  }
  func.func @transform_1(%arg0: i32) -> (i32, i32) {
    %c0_i32 = arith.constant 0 : i32
    %c0_i32_0 = arith.constant 0 : i32
    %c0_i32_1 = arith.constant 0 : i32
    return %c0_i32, %c0_i32_0 : i32, i32
  }
  func.func @transform_2(%arg0: i32) -> (i32, i32) {
    %c0_i32 = arith.constant 0 : i32
    %c0_i32_0 = arith.constant 0 : i32
    return %arg0, %c0_i32 : i32, i32
  }
}

</mosaic_0001>

<llo_original>
// kernel: slstm_forward.1
$region0: #{slstm_forward.1}
  #allocation0 [shape = 'u32[]', space=smem, size = 0x4, offset = 0x4, fixed_abs, tag = 'smem constant byte address 0x4 - core index']
  #allocation1 [shape = 'u32[72,128]{1,0:T(1,128)}', space=vmem, size = 0x9000, scoped, tag = 'internal scratch']
  %s0 = inlined_call_operand.hbm [shape: f32[16,32], index: 0, kind: input, shape index: {}]
  %s1 = inlined_call_operand.hbm [shape: bf16[64,128], index: 1, kind: input, shape index: {}]
  %s2 = inlined_call_operand.hbm [shape: f32[16,128], index: 2, kind: output, shape index: {}]
  %s3 = sld [smem:[#allocation0]]
  $region26: #{slstm_forward.1} parent=0
    _
  %s5 = ssub.s32 1, %s3
  %s6 = scalar_select 0, %s5, %s3
  $region1: #{slstm_forward.1} parent=0
    #allocation2 [shape = 'u8[8192]{0}', space=vmem, size = 0x2000, scoped, tag = 'input window, operand 0, single buffered']
    #allocation3 [shape = 's32[1]{0}', space=sflag, size = 0x4, scoped, tag = 'scoped memory for slstm_forward.1']
    #allocation4 [shape = 's32[1]{0}', space=sflag, size = 0x4, scoped, tag = 'scoped memory for slstm_forward.1']
    #allocation5 [shape = 'u8[16384]{0}', space=vmem, size = 0x4000, scoped, tag = 'input window, operand 1, single buffered']
    #allocation6 [shape = 's32[1]{0}', space=sflag, size = 0x4, scoped, tag = 'scoped memory for slstm_forward.1']
    #allocation7 [shape = 'u8[8192]{0}', space=vmem, size = 0x2000, scoped, tag = 'output window, operand 0, single buffered']
    %7 = vsyncpa [#allocation3], 0
    %8 = vsyncpa [#allocation6], 0
    %9 = vsyncpa [#allocation4], 0
    // Predicated region
    $region2: #{slstm_forward.1} parent=1 // pred_check
      _
    $region3: #{slstm_forward.1} parent=1 // pred_check_branch
      %11 = sbr.rel (0) target = $region5
    $region4: #{slstm_forward.1} parent=1 // pred_region
      %13 = vsyncadd [#allocation3], 0
      %s14 = sshll.u32 %s0, 4
      %s15 = int_to_ptr.hbm [resolvable:$true] %s14
      %s16 = sshll.u32 [#allocation2], 4
      %s17 = int_to_ptr.vmem [resolvable:$true] %s16
      %22 = dma.hbm_to_vmem [thread:$0]  %s15, 256, %s17, [#allocation3], 128, 128, 8
    $region5: #{slstm_forward.1} parent=1 // pred_fallthru
      _
    // Predicated region
    $region6: #{slstm_forward.1} parent=1 // pred_check
      _
    $region7: #{slstm_forward.1} parent=1 // pred_check_branch
      %24 = sbr.rel (0) target = $region9
    $region8: #{slstm_forward.1} parent=1 // pred_region
      %26 = vsyncadd [#allocation6], 0
      %s27 = sshll.u32 %s1, 4
      %s28 = int_to_ptr.hbm [resolvable:$true] %s27
      %s29 = sshll.u32 [#allocation5], 4
      %s30 = int_to_ptr.vmem [resolvable:$true] %s29
      %35 = dma.hbm_to_vmem [thread:$0]  %s28, 512, %s30, [#allocation6], 64, 64, 4
    $region9: #{slstm_forward.1} parent=1 // pred_fallthru
      _
    // Predicated region
    $region10: #{slstm_forward.1} parent=1 // pred_check
      _
    $region11: #{slstm_forward.1} parent=1 // pred_check_branch
      %37 = sbr.rel (0) target = $region13
    $region12: #{slstm_forward.1} parent=1 // pred_region
      %39 = dma.done [#allocation3], 256
    $region13: #{slstm_forward.1} parent=1 // pred_fallthru
      _
    // Predicated region
    $region14: #{slstm_forward.1} parent=1 // pred_check
      _
    $region15: #{slstm_forward.1} parent=1 // pred_check_branch
      %41 = sbr.rel (0) target = $region17
    $region16: #{slstm_forward.1} parent=1 // pred_region
      %43 = dma.done [#allocation6], 512
    $region17: #{slstm_forward.1} parent=1 // pred_fallthru
      _
    %v45 = vld [vmem:[#allocation2] sm:$0xff]
    %v46 = vld [vmem:[#allocation2 + $0x8] sm:$0xff]
    %v47 = vxor.u32 %v45, 2147483648
    %v48 = vxor.u32 %v46, 2147483648
    %v49 = vmul.f32 %v47, 1.442695
    %v50 = vpow.pop %v49
    %v51 = vmul.f32 %v48, 1.442695
    %v52 = vpow.pop %v51
    %v53 = vadd.f32 %v50, 1.0
    %v54 = vadd.f32 %v52, 1.0
    %v55 = vrcp.pop %v53
    %v56 = vmul.f32 %v53, %v55
    %v57 = vsub.f32 1.0, %v56
    %v58 = vmul.f32 %v55, %v57
    %v59 = vadd.f32 %v55, %v58
    %vm60 = vweird.f32 %v53
    %vm61 = vweird.f32 %v55
    %vm62 = vmor %vm60, %vm61
    %v63 = vsel %vm62, %v55, %v59
    %v64 = vand.u32 2147483647, %v53
    %vm65 = vcmp.eq.f32.partialorder %v64, 8.507059e+37
    %v66 = vand.u32 %v53, 2147483648
    %v67 = vor.u32 1.1754944e-38, %v66
    %v68 = vsel %vm65, %v67, %v63
    %v69 = vmul.f32 1.0, %v68
    %v70 = vrcp.pop %v54
    %v71 = vmul.f32 %v54, %v70
    %v72 = vsub.f32 1.0, %v71
    %v73 = vmul.f32 %v70, %v72
    %v74 = vadd.f32 %v70, %v73
    %vm75 = vweird.f32 %v54
    %vm76 = vweird.f32 %v70
    %vm77 = vmor %vm75, %vm76
    %v78 = vsel %vm77, %v70, %v74
    %v79 = vand.u32 2147483647, %v54
    %vm80 = vcmp.eq.f32.partialorder %v79, 8.507059e+37
    %v81 = vand.u32 %v54, 2147483648
    %v82 = vor.u32 1.1754944e-38, %v81
    %v83 = vsel %vm80, %v82, %v78
    %v84 = vmul.f32 1.0, %v83
    %v85 = vmul.f32 %v45, %v69
    %v86 = vmul.f32 %v46, %v84
    %89 = vrot.lane.b32.xlu0 %v45, 32
    %v90 = vpop.permute.xlu0 %89
    %91 = vrot.lane.b32.xlu0 %v46, 32
    %v92 = vpop.permute.xlu0 %91
    %vm95 = vcmask 261120
    %v96 = vsel %vm95, %v85, %v90
    %v97 = vsel %vm95, %v86, %v92
    %v98 = vpack.c.bf16 %v97, %v96
    %v99 = vld [vmem:[#allocation5] sm:$0xf]
    %v100 = vld [vmem:[#allocation5 + $0x4] sm:$0xf]
    %v101 = vld [vmem:[#allocation5 + $0x8] sm:$0xf]
    %v102 = vld [vmem:[#allocation5 + $0xc] sm:$0xf]
    %v103 = vld [vmem:[#allocation5 + $0x10] sm:$0xf]
    %v104 = vld [vmem:[#allocation5 + $0x14] sm:$0xf]
    %v105 = vld [vmem:[#allocation5 + $0x18] sm:$0xf]
    %v106 = vld [vmem:[#allocation5 + $0x1c] sm:$0xf]
    %v115 = vunpack.c.l.b16 %v99
    %v116 = vunpack.c.l.b16 %v100
    %v117 = vunpack.c.l.b16 %v101
    %v118 = vunpack.c.l.b16 %v102
    %v119 = vunpack.c.l.b16 %v103
    %v120 = vunpack.c.l.b16 %v104
    %v121 = vunpack.c.l.b16 %v105
    %v122 = vunpack.c.l.b16 %v106
    %v123 = vpack.c.b16 %v116, %v115
    %v124 = vpack.c.b16 %v118, %v117
    %v125 = vpack.c.b16 %v120, %v119
    %v126 = vpack.c.b16 %v122, %v121
    %vm131 = vcmask 523264
    %v133 = vsel %vm131, %v98, 0
    %135 = vmatpush.bf16.msra.mxu0 0
    %136 = vmatpush.bf16.msra.mxu0 0
    %137 = vmatpush.bf16.msra.mxu0 0
    %138 = vmatpush.bf16.msra.mxu0 0
    %139 = vmatpush.bf16.msra.mxu0 %v126
    %140 = vmatpush.bf16.msra.mxu0 %v125
    %141 = vmatpush.bf16.msra.mxu0 %v124
    %142 = vmatpush.bf16.msra.mxu0 %v123
    %143 = vmatmul.bf16.gmra.mxu0 %v133
    %v144 = vpop.f32.mrf.mxu0
    %v145 = vadd.f32 0.0, %v144
    %v146 = vpop.f32.mrf.mxu0
    %v147 = vadd.f32 0.0, %v146
    %148 = vdwg.mxu0
    %149 = vst [vmem:[#allocation7] sm:$0xff] %v145
    %150 = vst [vmem:[#allocation7 + $0x8] sm:$0xff] %v147
    // Predicated region
    $region18: #{slstm_forward.1} parent=1 // pred_check
      _
    $region19: #{slstm_forward.1} parent=1 // pred_check_branch
      %152 = sbr.rel (0) target = $region21
    $region20: #{slstm_forward.1} parent=1 // pred_region
      %154 = vsyncadd [#allocation4], 0
      %s155 = sshll.u32 [#allocation7], 4
      %s156 = int_to_ptr.vmem [resolvable:$true] %s155
      %s157 = sshll.u32 %s2, 4
      %s158 = int_to_ptr.hbm [resolvable:$true] %s157
      %163 = dma.vmem_to_hbm [thread:$0]  %s156, 256, %s158, [#allocation4], 128, 128, 8
    $region21: #{slstm_forward.1} parent=1 // pred_fallthru
      _
    // Predicated region
    $region22: #{slstm_forward.1} parent=1 // pred_check
      _
    $region23: #{slstm_forward.1} parent=1 // pred_check_branch
      %165 = sbr.rel (0) target = $region25
    $region24: #{slstm_forward.1} parent=1 // pred_region
      %167 = dma.done [#allocation4], 256
    $region25: #{slstm_forward.1} parent=1 // pred_fallthru
      _
    %168 = vsyncpa [#allocation3], 1
    %169 = vsyncpa [#allocation6], 1
    %170 = vsyncpa [#allocation4], 1

</llo_original>
